<compile_context>
chip_gen: v7x
topology: tpu7x:2x2x1
jax: 0.10.0
libtpu: 0.0.40
codegen_flags: <defaults>
</compile_context>

<pallas_src>
import math

import jax
import jax.numpy as jnp
from jax.experimental import pallas as pl
from jax.experimental.pallas import tpu as pltpu


def tanh_gate_kernel(q_ref, c_ref, w_ref, b_ref, out_ref, g_ref, g_sc):
    """One grid step (i = B block, j = block along the folded q rows).

    q_ref   : (b_tile, m_tile, P)  q.dtype
    c_ref   : (b_tile, H_in)
    w_ref   : (H_in, P)            weight replicated to one lcm(H_out,128) period
    b_ref   : (1, P)
    out_ref : (b_tile, m_tile, P)  q.dtype
    g_ref   : (b_tile, H_out)      gate output (un-replicated)
    g_sc    : (b_tile, P)          VMEM scratch, carried across the j axis
    """
    h_out = g_ref.shape[-1]

    @pl.when(pl.program_id(1) == 0)
    def _():
        # Gate computed once per B block, bounded to a single P-lane period:
        # MXU matmul + EUP tanh over b_tile * P elements, independent of how
        # much q is streamed (fixes the EUP-bound risk of the old version).
        gate = jnp.tanh(
            jnp.dot(c_ref[...], w_ref[...], preferred_element_type=jnp.float32)
            + b_ref[...]
        )
        g_sc[...] = gate.astype(g_sc.dtype)
        g_ref[...] = gate[:, :h_out].astype(g_ref.dtype)

    # Mem-bound hot path: exactly one multiply per q element, in q's dtype.
    # g_sc broadcasts over the folded-row (sublane) axis, which is cheap and
    # off the HBM-bound critical path.
    out_ref[...] = (q_ref[...] * g_sc[...][:, None, :]).astype(out_ref.dtype)


# ---- tiling heuristics -------------------------------------------------------

_TARGET_BLOCK_BYTES = 2 * 1024 * 1024   # aim ~2 MiB of q per grid step
_MAX_BLOCK_BYTES = 4 * 1024 * 1024      # hard per-block cap (v7x VMEM safe)


def _sublane_multiple(dtype):
    # dtype-aware sublane packing: f32 -> 8, bf16/f16 -> 16, int8/fp8 -> 32
    return {4: 8, 2: 16, 1: 32}.get(jnp.dtype(dtype).itemsize, 8)


def _largest_divisor_multiple(n, multiple, cap):
    """Largest d with d % multiple == 0, n % d == 0, d <= cap (or None)."""
    best = None
    d = multiple
    while d <= cap:
        if n % d == 0:
            best = d
        d += multiple
    return best


def _choose_b_tile(B, P, M, itemsize, sub):
    # b_tile must be a multiple of the sublane count (or == B) so the 2-D
    # c / gate blocks satisfy the (8, 128) tiling rule.
    if B % sub != 0 or B < 2 * sub:
        return B                                   # single B block
    # Cap b_tile so even a minimal 8-row m_tile stays under the block budget.
    row_bytes = P * itemsize * min(M, 8)
    cap = max(sub, _MAX_BLOCK_BYTES // max(1, row_bytes))
    # Prefer nb >= 2 so the "parallel" B axis can use both v7x TensorCores.
    bt = _largest_divisor_multiple(B, sub, min(cap, B // 2))
    if bt is None:
        bt = _largest_divisor_multiple(B, sub, min(cap, B))
    return bt if bt is not None else B


def _choose_m_tile(M, b_tile, P, itemsize):
    row_bytes = b_tile * P * itemsize
    cap = max(1, _TARGET_BLOCK_BYTES // max(1, row_bytes))
    if cap >= M:
        return M                                   # whole folded axis per step
    mt = _largest_divisor_multiple(M, 8, cap)      # exact divisor preferred
    if mt is None:
        mt = min(M, max(8, (cap // 8) * 8))        # partial edge block is OK
        if mt != M and mt % 8 != 0:
            mt = M
    return mt


# ---- wrapper -----------------------------------------------------------------

def tanh_gate(q, c, w, b, *, max_m_tile=None):
    """Pallas TanhGate forward.

    q: (B, T, H_out), c: (B, H_in), w: (H_in, H_out), b: (1, H_out).
    Returns (q * g, g) with g of shape (B, 1, H_out).
    """
    B, T, H_out = q.shape
    H_in = c.shape[-1]
    F = T * H_out
    itemsize = jnp.dtype(q.dtype).itemsize
    sub = _sublane_multiple(q.dtype)

    # Lane-dense folding: view q as (B, M, P) with P = lcm(H_out, 128), so
    # every store is a full-lane vst and the gate repeats with period P along
    # the last axis.  Fall back to the natural layout when F % P != 0
    # (correct, but masked stores when H_out < 128).
    P = (H_out * 128) // math.gcd(H_out, 128)
    if F % P == 0:
        M = F // P
    else:
        P, M = H_out, T
    reps = P // H_out

    q3 = q.reshape(B, M, P)
    # Only a single lcm period is replicated (H_in x P, a few KiB) — the big
    # HBM-resident W_rep of the previous version is gone.
    w_p = w if reps == 1 else jnp.tile(w, (1, reps))
    b_p = b if reps == 1 else jnp.tile(b, (1, reps))

    b_tile = _choose_b_tile(B, P, M, itemsize, sub)
    m_tile = _choose_m_tile(M, b_tile, P, itemsize)
    if max_m_tile is not None and max_m_tile < m_tile:
        if max_m_tile == M or max_m_tile % 8 == 0:   # keep the block legal
            m_tile = max_m_tile
    nb = pl.cdiv(B, b_tile)
    nm = pl.cdiv(M, m_tile)

    # VMEM footprint: double-buffered q in + out, gate scratch, tiny constants.
    blk = b_tile * m_tile * P * itemsize
    small = (
        b_tile * H_in * jnp.dtype(c.dtype).itemsize
        + H_in * P * jnp.dtype(w.dtype).itemsize
        + P * jnp.dtype(b.dtype).itemsize
        + b_tile * H_out * itemsize
    )
    vmem_need = 4 * blk + b_tile * P * itemsize + 2 * small
    # 32 MiB floor is enough for the <=4 MiB blocks chosen above and is safe on
    # v7x (64 MiB physical); clamp at 64 MiB so larger configs still compile
    # everywhere.
    vmem_limit = int(min(64 * 1024 * 1024, max(32 * 1024 * 1024, vmem_need * 3 // 2)))

    flops = 2 * B * H_in * P + B * F          # replicated gate matmul + q * g
    transcendentals = B * P                   # tanh over one period per B row
    bytes_accessed = (
        2 * B * F * itemsize                  # q in + out
        + B * H_in * jnp.dtype(c.dtype).itemsize
        + H_in * P * jnp.dtype(w.dtype).itemsize
        + P * jnp.dtype(b.dtype).itemsize
        + B * H_out * itemsize                # g out
    )

    out3, g2 = pl.pallas_call(
        tanh_gate_kernel,
        out_shape=(
            jax.ShapeDtypeStruct((B, M, P), q.dtype),      # q * g (folded)
            jax.ShapeDtypeStruct((B, H_out), q.dtype),     # g
        ),
        grid_spec=pltpu.PrefetchScalarGridSpec(
            num_scalar_prefetch=0,
            grid=(nb, nm),
            in_specs=[
                pl.BlockSpec((b_tile, m_tile, P), lambda i, j: (i, j, 0)),  # q
                pl.BlockSpec((b_tile, H_in), lambda i, j: (i, 0)),          # c
                pl.BlockSpec((H_in, P), lambda i, j: (0, 0)),               # w (1 period)
                pl.BlockSpec((1, P), lambda i, j: (0, 0)),                  # b (1 period)
            ],
            out_specs=(
                pl.BlockSpec((b_tile, m_tile, P), lambda i, j: (i, j, 0)),  # q * g
                pl.BlockSpec((b_tile, H_out), lambda i, j: (i, 0)),         # g
            ),
            scratch_shapes=[pltpu.VMEM((b_tile, P), q.dtype)],              # gate period
        ),
        compiler_params=pltpu.CompilerParams(
            dimension_semantics=("parallel", "arbitrary"),
            vmem_limit_bytes=vmem_limit,
        ),
        cost_estimate=pl.CostEstimate(
            flops=flops,
            transcendentals=transcendentals,
            bytes_accessed=bytes_accessed,
        ),
        # TODO(synk): add input_output_aliases for q when the caller can donate it.
    )(q3, c, w_p, b_p)

    return out3.reshape(B, T, H_out), g2.reshape(B, 1, H_out)


def reference(q, c, w, b):
    g = jnp.tanh(c @ w + b)[:, None, :]
    return q * g, g


if __name__ == "__main__":
    # TODO(synk): init_linear from the original repo is not defined in the spec;
    # a deterministic uniform(+/- 1/sqrt(H)) init is used as a stand-in.
    def run_case(key, B, T, H, max_m_tile=None):
        kq, kc, kw, kb = jax.random.split(key, 4)
        q = jax.random.normal(kq, (B, T, H), dtype=jnp.float32)
        c = jax.random.normal(kc, (B, H), dtype=jnp.float32)
        bound = 1.0 / math.sqrt(H)
        w = jax.random.uniform(kw, (H, H), jnp.float32, -bound, bound)
        b = jax.random.uniform(kb, (1, H), jnp.float32, -bound, bound)

        out, g = tanh_gate(q, c, w, b, max_m_tile=max_m_tile)
        out = jax.block_until_ready(out)
        g = jax.block_until_ready(g)

        ref_out, ref_g = reference(q, c, w, b)
        assert out.shape == (B, T, H) and g.shape == (B, 1, H)
        assert jnp.allclose(out, ref_out, atol=1e-5, rtol=1e-5)
        assert jnp.allclose(g, ref_g, atol=1e-5, rtol=1e-5)

    k0, k1, k2 = jax.random.split(jax.random.PRNGKey(0), 3)
    # Lane-dense folded layout, single grid step.
    run_case(k0, B=2, T=8, H=32)
    # Multi-step folded axis: exercises the pl.when(j == 0) gate-compute and
    # the scratch-carry across j.
    run_case(k1, B=2, T=64, H=32, max_m_tile=8)
    # T*H_out not a multiple of 128: exercises the natural-layout fallback.
    run_case(k2, B=2, T=3, H=32)

    print("KERNEL_OK")
</pallas_src>

<mosaic_0001>
module attributes {stable_mosaic.version = 11 : i64} {
  func.func @tanh_gate_kernel(%arg0: i32, %arg1: i32, %arg2: memref<2x2x128xf32, #tpu.memory_space<vmem>>, %arg3: memref<2x32xf32, #tpu.memory_space<vmem>>, %arg4: memref<32x128xf32, #tpu.memory_space<vmem>>, %arg5: memref<1x128xf32, #tpu.memory_space<vmem>>, %arg6: memref<2x2x128xf32, #tpu.memory_space<vmem>>, %arg7: memref<2x32xf32, #tpu.memory_space<vmem>>, %arg8: memref<2x128xf32, #tpu.memory_space<vmem>>) attributes {dimension_semantics = [#tpu.dimension_semantics<parallel>, #tpu.dimension_semantics<arbitrary>], iteration_bounds = array<i64: 1, 1>, scalar_prefetch = 0 : i64, scratch_operands = 1 : i64, tpu.core_type = #tpu.core_type<tc>, window_params = [{transform_indices = @transform_0, window_bounds = array<i64: 2, 2, 128>}, {transform_indices = @transform_1, window_bounds = array<i64: 2, 32>}, {pipeline_mode = #tpu.pipeline_mode<synchronous>, transform_indices = @transform_2, window_bounds = array<i64: 32, 128>}, {pipeline_mode = #tpu.pipeline_mode<synchronous>, transform_indices = @transform_3, window_bounds = array<i64: 1, 128>}, {transform_indices = @transform_4, window_bounds = array<i64: 2, 2, 128>}, {transform_indices = @transform_5, window_bounds = array<i64: 2, 32>}]} {
    %c0_i32 = arith.constant 0 : i32
    %0 = arith.cmpi eq, %arg1, %c0_i32 : i32
    %1 = arith.extui %0 : i1 to i32
    %c0_i32_0 = arith.constant 0 : i32
    %2 = arith.cmpi ne, %1, %c0_i32_0 : i32
    scf.if %2 {
      %c0_8 = arith.constant 0 : index
      %c0_9 = arith.constant 0 : index
      %9 = vector.load %arg3[%c0_8, %c0_9] : memref<2x32xf32, #tpu.memory_space<vmem>>, vector<2x32xf32>
      %c0_10 = arith.constant 0 : index
      %c0_11 = arith.constant 0 : index
      %10 = vector.load %arg4[%c0_10, %c0_11] : memref<32x128xf32, #tpu.memory_space<vmem>>, vector<32x128xf32>
      %cst = arith.constant dense<0.000000e+00> : vector<2x128xf32>
      %11 = tpu.matmul %9, %10, %cst {dimension_numbers = #tpu.dot_dimension_numbers<[1], [0], [0], [1], [0, 0, 1, 1], [], []>} : vector<2x32xf32>, vector<32x128xf32>, vector<2x128xf32> -> vector<2x128xf32>
      %c0_12 = arith.constant 0 : index
      %c0_13 = arith.constant 0 : index
      %12 = vector.load %arg5[%c0_12, %c0_13] : memref<1x128xf32, #tpu.memory_space<vmem>>, vector<1x128xf32>
      %13 = vector.broadcast %12 : vector<1x128xf32> to vector<2x128xf32>
      %14 = arith.addf %11, %13 : vector<2x128xf32>
      %15 = math.tanh %14 : vector<2x128xf32>
      %c0_14 = arith.constant 0 : index
      %c0_15 = arith.constant 0 : index
      %16 = vector.load %arg8[%c0_14, %c0_15] : memref<2x128xf32, #tpu.memory_space<vmem>>, vector<2x128xf32>
      tpu.vector_store %arg8[%c0_14, %c0_15], %15 {strides = array<i32>} : memref<2x128xf32, #tpu.memory_space<vmem>>, vector<2x128xf32>,
      %17 = vector.extract_strided_slice %15 {offsets = [0, 0], sizes = [2, 32], strides = [1, 1]} : vector<2x128xf32> to vector<2x32xf32>
      %c0_16 = arith.constant 0 : index
      %c0_17 = arith.constant 0 : index
      %18 = vector.load %arg7[%c0_16, %c0_17] : memref<2x32xf32, #tpu.memory_space<vmem>>, vector<2x32xf32>
      tpu.vector_store %arg7[%c0_16, %c0_17], %17 {strides = array<i32>} : memref<2x32xf32, #tpu.memory_space<vmem>>, vector<2x32xf32>,
    } else {
    }
    %c0 = arith.constant 0 : index
    %c0_1 = arith.constant 0 : index
    %c0_2 = arith.constant 0 : index
    %3 = vector.load %arg2[%c0, %c0_1, %c0_2] : memref<2x2x128xf32, #tpu.memory_space<vmem>>, vector<2x2x128xf32>
    %c0_3 = arith.constant 0 : index
    %c0_4 = arith.constant 0 : index
    %4 = vector.load %arg8[%c0_3, %c0_4] : memref<2x128xf32, #tpu.memory_space<vmem>>, vector<2x128xf32>
    %5 = vector.shape_cast %4 : vector<2x128xf32> to vector<2x1x128xf32>
    %6 = vector.broadcast %5 : vector<2x1x128xf32> to vector<2x2x128xf32>
    %7 = arith.mulf %3, %6 : vector<2x2x128xf32>
    %c0_5 = arith.constant 0 : index
    %c0_6 = arith.constant 0 : index
    %c0_7 = arith.constant 0 : index
    %8 = vector.load %arg6[%c0_5, %c0_6, %c0_7] : memref<2x2x128xf32, #tpu.memory_space<vmem>>, vector<2x2x128xf32>
    tpu.vector_store %arg6[%c0_5, %c0_6, %c0_7], %7 {strides = array<i32>} : memref<2x2x128xf32, #tpu.memory_space<vmem>>, vector<2x2x128xf32>,
    return
  }
  func.func @transform_0(%arg0: i32, %arg1: i32) -> (i32, i32, i32) {
    %c0_i32 = arith.constant 0 : i32
    %c0_i32_0 = arith.constant 0 : i32
    return %arg0, %arg1, %c0_i32 : i32, i32, i32
  }
  func.func @transform_1(%arg0: i32, %arg1: i32) -> (i32, i32) {
    %c0_i32 = arith.constant 0 : i32
    %c0_i32_0 = arith.constant 0 : i32
    return %arg0, %c0_i32 : i32, i32
  }
  func.func @transform_2(%arg0: i32, %arg1: i32) -> (i32, i32) {
    %c0_i32 = arith.constant 0 : i32
    %c0_i32_0 = arith.constant 0 : i32
    %c0_i32_1 = arith.constant 0 : i32
    return %c0_i32, %c0_i32_0 : i32, i32
  }
  func.func @transform_3(%arg0: i32, %arg1: i32) -> (i32, i32) {
    %c0_i32 = arith.constant 0 : i32
    %c0_i32_0 = arith.constant 0 : i32
    %c0_i32_1 = arith.constant 0 : i32
    return %c0_i32, %c0_i32_0 : i32, i32
  }
  func.func @transform_4(%arg0: i32, %arg1: i32) -> (i32, i32, i32) {
    %c0_i32 = arith.constant 0 : i32
    %c0_i32_0 = arith.constant 0 : i32
    return %arg0, %arg1, %c0_i32 : i32, i32, i32
  }
  func.func @transform_5(%arg0: i32, %arg1: i32) -> (i32, i32) {
    %c0_i32 = arith.constant 0 : i32
    %c0_i32_0 = arith.constant 0 : i32
    return %arg0, %c0_i32 : i32, i32
  }
}

</mosaic_0001>

<llo_original>
// kernel: tpu_custom_call.1
$region0: #{tpu_custom_call.1}
  #allocation0 [shape = 'u32[]', space=smem, size = 0x4, offset = 0x4, fixed_abs, tag = 'smem constant byte address 0x4 - core index']
  #allocation1 [shape = 'u32[144,128]{1,0:T(1,128)}', space=vmem, size = 0x12000, scoped, tag = 'internal scratch']
  #allocation2 [shape = 'f32[2,128]{1,0:T(2,128)}', space=vmem, size = 0x400, scoped, tag = 'scratch operand']
  %s0 = inlined_call_operand.hbm [shape: f32[2,2,128], index: 0, kind: input, shape index: {}]
  %s1 = inlined_call_operand.vmem [shape: f32[2,32], index: 1, kind: input, shape index: {}]
  %s2 = inlined_call_operand.hbm [shape: f32[32,128], index: 2, kind: input, shape index: {}]
  %s3 = inlined_call_operand.vmem [shape: f32[1,128], index: 3, kind: input, shape index: {}]
  %s4 = inlined_call_operand.hbm [shape: f32[2,2,128], index: 4, kind: output, shape index: {0}]
  %s5 = inlined_call_operand.hbm [shape: f32[2,32], index: 5, kind: output, shape index: {1}]
  %6 = xla_tuple %s4, %s5
  %s7 = sld [smem:[#allocation0]]
  $region46: #{tpu_custom_call.1} parent=0
    _
  %s9 = ssub.s32 1, %s7
  %s10 = scalar_select 0, %s9, %s7
  $region1: #{tpu_custom_call.1} parent=0
    #allocation3 [shape = 'u8[2048]{0}', space=vmem, size = 0x800, scoped, tag = 'input window, operand 0, single buffered']
    #allocation4 [shape = 's32[1]{0}', space=sflag, size = 0x4, scoped, tag = 'scoped memory for tpu_custom_call.1']
    #allocation5 [shape = 's32[1]{0}', space=sflag, size = 0x4, scoped, tag = 'scoped memory for tpu_custom_call.1']
    #allocation6 [shape = 'u8[16384]{0}', space=vmem, size = 0x4000, scoped, tag = 'input window, operand 2, single buffered']
    #allocation7 [shape = 's32[1]{0}', space=sflag, size = 0x4, scoped, tag = 'scoped memory for tpu_custom_call.1']
    #allocation8 [shape = 'u8[2048]{0}', space=vmem, size = 0x800, scoped, tag = 'output window, operand 0, single buffered']
    #allocation9 [shape = 'u8[1024]{0}', space=vmem, size = 0x400, scoped, tag = 'output window, operand 1, single buffered']
    #allocation10 [shape = 's32[1]{0}', space=sflag, size = 0x4, scoped, tag = 'scoped memory for tpu_custom_call.1']
    %11 = vsyncpa [#allocation4], 0
    %12 = vsyncpa [#allocation7], 0
    %13 = vsyncpa [#allocation5], 0
    %14 = vsyncpa [#allocation10], 0
    // Predicated region
    $region2: #{tpu_custom_call.1} parent=1 // pred_check
      _
    $region3: #{tpu_custom_call.1} parent=1 // pred_check_branch
      %16 = sbr.rel (0) target = $region5
    $region4: #{tpu_custom_call.1} parent=1 // pred_region
      %s18 = ssub.s32 64, 64
      %19 = vsyncadd [#allocation4], %s18
      %s20 = sshll.u32 [#allocation3], 4
      %s21 = int_to_ptr.vmem [resolvable:$true] %s20
      %26 = dma.hbm_to_vmem [thread:$0]  %s0, 64, %s21, [#allocation4], 32, 32, 2
    $region5: #{tpu_custom_call.1} parent=1 // pred_fallthru
      _
    // Predicated region
    $region6: #{tpu_custom_call.1} parent=1 // pred_check
      _
    $region7: #{tpu_custom_call.1} parent=1 // pred_check_branch
      %28 = sbr.rel (0) target = $region9
    $region8: #{tpu_custom_call.1} parent=1 // pred_region
      _
    $region9: #{tpu_custom_call.1} parent=1 // pred_fallthru
      _
    // Predicated region
    $region10: #{tpu_custom_call.1} parent=1 // pred_check
      _
    $region11: #{tpu_custom_call.1} parent=1 // pred_check_branch
      %30 = sbr.rel (0) target = $region13
    $region12: #{tpu_custom_call.1} parent=1 // pred_region
      %s32 = ssub.s32 512, 512
      %33 = vsyncadd [#allocation7], %s32
      %s34 = sshll.u32 [#allocation6], 4
      %s35 = int_to_ptr.vmem [resolvable:$true] %s34
      %40 = dma.hbm_to_vmem [thread:$0]  %s2, 512, %s35, [#allocation7], 128, 128, 8
    $region13: #{tpu_custom_call.1} parent=1 // pred_fallthru
      _
    // Predicated region
    $region14: #{tpu_custom_call.1} parent=1 // pred_check
      _
    $region15: #{tpu_custom_call.1} parent=1 // pred_check_branch
      %42 = sbr.rel (0) target = $region17
    $region16: #{tpu_custom_call.1} parent=1 // pred_region
      _
    $region17: #{tpu_custom_call.1} parent=1 // pred_fallthru
      _
    // Predicated region
    $region18: #{tpu_custom_call.1} parent=1 // pred_check
      _
    $region19: #{tpu_custom_call.1} parent=1 // pred_check_branch
      %44 = sbr.rel (0) target = $region21
    $region20: #{tpu_custom_call.1} parent=1 // pred_region
      %45 = dma.done [#allocation4], 64
    $region21: #{tpu_custom_call.1} parent=1 // pred_fallthru
      _
    // Predicated region
    $region22: #{tpu_custom_call.1} parent=1 // pred_check
      _
    $region23: #{tpu_custom_call.1} parent=1 // pred_check_branch
      %47 = sbr.rel (0) target = $region25
    $region24: #{tpu_custom_call.1} parent=1 // pred_region
      %48 = dma.done [#allocation7], 512
    $region25: #{tpu_custom_call.1} parent=1 // pred_fallthru
      _
    %p49 = scmp.eq.s32.totalorder 0, 0
    // Predicated region
    $region26: #{tpu_custom_call.1} parent=1 // pred_check
      %p50 = pneg %p49
    $region27: #{tpu_custom_call.1} parent=1 // pred_check_branch
      %52 = sbr.rel (%p50) target = $region29
    $region28: #{tpu_custom_call.1} parent=1 // pred_region
      %v53 = vld [vmem:[%s1] sm:$0x3]
      %v54 = vld [vmem:[#allocation6] sm:$0xff]
      %v55 = vld [vmem:[#allocation6 + $0x8] sm:$0xff]
      %v56 = vld [vmem:[#allocation6 + $0x10] sm:$0xff]
      %v57 = vld [vmem:[#allocation6 + $0x18] sm:$0xff]
      %v58 = vld [vmem:[%s3] sm:$0x1]
      %v60 = vlaneseq
      %v61 = vshrl.u32 %v60, 7
      %v62 = vsub.s32 0, %v61
      %v63 = vrot.slane %v58, %v62
      %vm65 = vcmask 261120
      %v67 = vsel %vm65, %v53, 0
      %69 = vmatprep.subr.mxu0 0.0
      %70 = vmatpush1.msra.mxu0 %v54
      %71 = vmatprep.subr.mxu0 0.0
      %72 = vmatpush1.msra.mxu0 %v55
      %73 = vmatprep.subr.mxu0 0.0
      %74 = vmatpush1.msra.mxu0 %v56
      %75 = vmatprep.subr.mxu0 0.0
      %76 = vmatpush1.msra.mxu0 %v57
      %77 = vmatprep.subr.mxu0 0.0
      %78 = vmatpush1.msra.mxu0 0.0
      %79 = vmatprep.subr.mxu0 0.0
      %80 = vmatpush1.msra.mxu0 0.0
      %81 = vmatprep.subr.mxu0 0.0
      %82 = vmatpush1.msra.mxu0 0.0
      %83 = vmatprep.subr.mxu0 0.0
      %84 = vmatpush1.msra.mxu0 0.0
      %85 = vmatprep.subr.mxu0 0.0
      %86 = vmatpush1.msra.mxu0 0.0
      %87 = vmatprep.subr.mxu0 0.0
      %88 = vmatpush1.msra.mxu0 0.0
      %89 = vmatprep.subr.mxu0 0.0
      %90 = vmatpush1.msra.mxu0 0.0
      %91 = vmatprep.subr.mxu0 0.0
      %92 = vmatpush1.msra.mxu0 0.0
      %93 = vmatprep.subr.mxu0 0.0
      %94 = vmatpush1.msra.mxu0 0.0
      %95 = vmatprep.subr.mxu0 0.0
      %96 = vmatpush1.msra.mxu0 0.0
      %97 = vmatprep.subr.mxu0 0.0
      %98 = vmatpush1.msra.mxu0 0.0
      %99 = vmatprep.subr.mxu0 0.0
      %100 = vmatpush1.msra.mxu0 0.0
      %101 = vmatprep.subr.mxu0 0.0
      %102 = vmatpush1.msra.mxu0 0.0
      %103 = vmatprep.subr.mxu0 0.0
      %104 = vmatpush1.msra.mxu0 0.0
      %105 = vmatprep.subr.mxu0 0.0
      %106 = vmatpush1.msra.mxu0 0.0
      %107 = vmatprep.subr.mxu0 0.0
      %108 = vmatpush1.msra.mxu0 0.0
      %109 = vmatprep.subr.mxu0 0.0
      %110 = vmatpush1.msra.mxu0 0.0
      %111 = vmatprep.subr.mxu0 0.0
      %112 = vmatpush1.msra.mxu0 0.0
      %113 = vmatprep.subr.mxu0 0.0
      %114 = vmatpush1.msra.mxu0 0.0
      %115 = vmatprep.subr.mxu0 0.0
      %116 = vmatpush1.msra.mxu0 0.0
      %117 = vmatprep.subr.mxu0 0.0
      %118 = vmatpush1.msra.mxu0 0.0
      %119 = vmatprep.subr.mxu0 0.0
      %120 = vmatpush1.msra.mxu0 0.0
      %121 = vmatprep.subr.mxu0 0.0
      %122 = vmatpush1.msra.mxu0 0.0
      %123 = vmatprep.subr.mxu0 0.0
      %124 = vmatpush1.msra.mxu0 0.0
      %125 = vmatprep.subr.mxu0 0.0
      %126 = vmatpush1.msra.mxu0 0.0
      %127 = vmatprep.subr.mxu0 0.0
      %128 = vmatpush1.msra.mxu0 0.0
      %129 = vmatprep.subr.mxu0 0.0
      %130 = vmatpush1.msra.mxu0 0.0
      %131 = vmatprep.subr.mxu0 0.0
      %132 = vmatpush1.msra.mxu0 0.0
      %133 = vmatprep.mubr.f32.mxu0 0.0
      %134 = vmatmul.mubr.f32.gmra.mrb[0].mxu0 %v67
      %v135 = vpop.f32.mrb[0].mxu0
      %v136 = vadd.f32 %v63, %v135
      %v137 = vpop.f32.mrb[0].mxu0
      %138 = vdwg.mxu0
      %v139 = vtanh.pop %v136
      %140 = vst [vmem:[#allocation2] sm:$0x3] %v139
      %vm141 = vcmask 254976
      %142 = vst.msk [vmem:[#allocation9] sm:$0x3] %vm141, %v139
    $region29: #{tpu_custom_call.1} parent=1 // pred_fallthru
      _
    %v143 = vld [vmem:[#allocation3] sm:$0x3]
    %v144 = vld [vmem:[#allocation3 + $0x2] sm:$0x3]
    %v145 = vld [vmem:[#allocation2] sm:$0x3]
    %v148 = vunpack.c.l.s4 1966171168
    %v149 = vunpack.c.0.s8 %v148
    %v150 = vlaneseq
    %v151 = vshrl.u32 %v150, 7
    %v152 = vsub.s32 %v149, %v151
    %v153 = vrot.slane %v145, %v152
    %v154 = vcombine.high %v153, %v153
    %v156 = vunpack.c.l.s4 1966171168
    %v157 = vunpack.c.0.s8 %v156
    %v158 = vlaneseq
    %v159 = vshrl.u32 %v158, 7
    %v160 = vsub.s32 %v157, %v159
    %v161 = vrot.slane %v153, %v160
    %v163 = vunpack.c.l.s4 1966171168
    %v164 = vunpack.c.0.s8 %v163
    %v165 = vlaneseq
    %v166 = vshrl.u32 %v165, 7
    %v167 = vsub.s32 %v164, %v166
    %v168 = vrot.slane %v154, %v167
    %v169 = vlaneseq
    %v170 = vshrl.u32 %v169, 7
    %v171 = vsub.s32 0, %v170
    %v172 = vrot.slane %v161, %v171
    %v173 = vlaneseq
    %v174 = vshrl.u32 %v173, 7
    %v175 = vsub.s32 0, %v174
    %v176 = vrot.slane %v168, %v175
    %v179 = vmul.f32 %v143, %v172
    %v180 = vmul.f32 %v144, %v176
    %181 = vst [vmem:[#allocation8] sm:$0x3] %v179
    %182 = vst [vmem:[#allocation8 + $0x2] sm:$0x3] %v180
    // Predicated region
    $region30: #{tpu_custom_call.1} parent=1 // pred_check
      _
    $region31: #{tpu_custom_call.1} parent=1 // pred_check_branch
      %184 = sbr.rel (0) target = $region33
    $region32: #{tpu_custom_call.1} parent=1 // pred_region
      %s186 = ssub.s32 64, 64
      %187 = vsyncadd [#allocation5], %s186
      %s188 = sshll.u32 [#allocation8], 4
      %s189 = int_to_ptr.vmem [resolvable:$true] %s188
      %194 = dma.vmem_to_hbm [thread:$0]  %s189, 64, %s4, [#allocation5], 32, 32, 2
    $region33: #{tpu_custom_call.1} parent=1 // pred_fallthru
      _
    // Predicated region
    $region34: #{tpu_custom_call.1} parent=1 // pred_check
      _
    $region35: #{tpu_custom_call.1} parent=1 // pred_check_branch
      %196 = sbr.rel (0) target = $region37
    $region36: #{tpu_custom_call.1} parent=1 // pred_region
      %s198 = ssub.s32 32, 32
      %199 = vsyncadd [#allocation10], %s198
      %s201 = sshll.u32 [#allocation9], 4
      %s202 = int_to_ptr.vmem [resolvable:$true] %s201
      %204 = dma.vmem_to_hbm [thread:$0]  %s202, 32, %s5, [#allocation10]
    $region37: #{tpu_custom_call.1} parent=1 // pred_fallthru
      _
    // Predicated region
    $region38: #{tpu_custom_call.1} parent=1 // pred_check
      _
    $region39: #{tpu_custom_call.1} parent=1 // pred_check_branch
      %206 = sbr.rel (0) target = $region41
    $region40: #{tpu_custom_call.1} parent=1 // pred_region
      %207 = dma.done [#allocation5], 64
    $region41: #{tpu_custom_call.1} parent=1 // pred_fallthru
      _
    // Predicated region
    $region42: #{tpu_custom_call.1} parent=1 // pred_check
      _
    $region43: #{tpu_custom_call.1} parent=1 // pred_check_branch
      %209 = sbr.rel (0) target = $region45
    $region44: #{tpu_custom_call.1} parent=1 // pred_region
      %210 = dma.done [#allocation10], 32
    $region45: #{tpu_custom_call.1} parent=1 // pred_fallthru
      _
    %211 = vsyncpa [#allocation4], 1
    %212 = vsyncpa [#allocation7], 1
    %213 = vsyncpa [#allocation5], 1
    %214 = vsyncpa [#allocation10], 1

</llo_original>
